<compile_context>
chip_gen: v7x
topology: tpu7x:2x2x1
jax: 0.10.0
libtpu: 0.0.40
codegen_flags: <defaults>
</compile_context>

<pallas_src>
import jax
import jax.numpy as jnp
from jax.experimental import pallas as pl
from jax.experimental.pallas import tpu as pltpu

KD = 5                      # knowledge_dim
NET_IN = KD + 5             # 10
H = 32                      # hidden width of each small head
P1, P2 = 512, 256           # prednet widths

NUM_HEADS = 5               # theta, a, b, g, s
HF = NUM_HEADS * H          # 160 fused hidden units
X_W = 6 * KD                # 30  = [stu | e_emb | k_emb | g_emb | s_emb | fmt]
ACT_W = 7 * KD              # 35  = X_W + kp
HEAD_OUT = 1 + KD + 1 + 1 + KD   # 13 = e_diff(1) | k_diff(5) | slip(1) | guess(1) | stat(5)
OUT_W = 16                  # packed output lanes (14 used, padded to 16)


def _round_up(x, m):
    return ((x + m - 1) // m) * m


def _posw(w):
    # PosLinear effective weight: 2 * relu(-w) + w   (== |w|)
    return 2.0 * jnp.maximum(-w, 0.0) + w


# ---------------------------------------------------------------------------
# Kernel
# ---------------------------------------------------------------------------
def net_lsirt_kernel(act_ref,
                     w1_ref, b1_ref, w2_ref, b2_ref,
                     p1w_ref, p1b_ref, p2w_ref, p2b_ref, p3w_ref, p3b_ref,
                     out_ref):
    f32 = jnp.float32
    sig = jax.nn.sigmoid

    x_all = act_ref[:, 0:X_W]            # (TB, 30)
    kp = act_ref[:, X_W:X_W + KD]        # (TB, 5)

    # fused first layers of the five heads (PosLinear transform already applied in wrapper)
    h = jnp.dot(x_all, w1_ref[...], preferred_element_type=f32) + b1_ref[...]
    h = jnp.maximum(h, 0.0)              # (TB, 160)

    # fused block-diagonal second layers (plain Linear) + sigmoid.
    # Columns are already in packed output order: [e_diff | k_diff(5) | slip | guess | stat(5)]
    head = sig(jnp.dot(h, w2_ref[...], preferred_element_type=f32) + b2_ref[...])  # (TB, 13)

    e_diff = head[:, 0:1]                        # (TB, 1)
    k_diff = head[:, 1:1 + KD]                   # (TB, 5)
    slip_ad = head[:, 1 + KD:2 + KD]             # (TB, 1)
    guess_ad = head[:, 2 + KD:3 + KD]            # (TB, 1)
    stat = head[:, 3 + KD:3 + 2 * KD]            # (TB, 5)

    # prednet (dropout = identity at inference); matmuls may run in bf16, accum f32
    mm_dt = p1w_ref.dtype
    x = (e_diff * (stat - k_diff) * kp).astype(mm_dt)                               # (TB, 5)
    x = sig(jnp.dot(x, p1w_ref[...], preferred_element_type=f32) + p1b_ref[...])    # (TB, 512)
    x = x.astype(mm_dt)
    x = sig(jnp.dot(x, p2w_ref[...], preferred_element_type=f32) + p2b_ref[...])    # (TB, 256)
    x = x.astype(mm_dt)
    out_p = sig(jnp.dot(x, p3w_ref[...], preferred_element_type=f32) + p3b_ref[...])  # (TB, 1)

    output = guess_ad + (slip_ad - guess_ad) * out_p                                # (TB, 1)

    # single packed, lane-contiguous output tile written with ONE full-tile store
    pad = jnp.zeros((output.shape[0], OUT_W - 1 - HEAD_OUT), f32)
    out_ref[...] = jnp.concatenate([output, head, pad], axis=-1)


# ---------------------------------------------------------------------------
# Parameter fusion (done once per call in the wrapper, outside the kernel)
# ---------------------------------------------------------------------------
def _fuse_params(params, matmul_dtype=jnp.bfloat16):
    f32 = jnp.float32

    def blk(h):          # column/row block of head h in the fused hidden dim
        return slice(h * H, (h + 1) * H)

    # column offsets of each field inside the packed activation slab
    STU, E, K, G, S, FMT = 0, KD, 2 * KD, 3 * KD, 4 * KD, 5 * KD

    # --- fused first layer: (30, 160), block-structured, PosLinear applied ---
    # hidden block order: theta=0, a=1, b=2, g=3, s=4
    w1f = jnp.zeros((X_W, HF), f32)
    # theta: stu only
    w1f = w1f.at[STU:STU + KD, blk(0)].set(_posw(params["th_w1"]))
    # a: [e_emb, fmt]
    wa = _posw(params["a_w1"])
    w1f = w1f.at[E:E + KD, blk(1)].set(wa[0:KD])
    w1f = w1f.at[FMT:FMT + KD, blk(1)].set(wa[KD:2 * KD])
    # b: [k_emb, fmt]
    wb = _posw(params["b_w1"])
    w1f = w1f.at[K:K + KD, blk(2)].set(wb[0:KD])
    w1f = w1f.at[FMT:FMT + KD, blk(2)].set(wb[KD:2 * KD])
    # g: [g_emb, fmt, stu]
    wg = _posw(params["g_w1"])
    w1f = w1f.at[G:G + KD, blk(3)].set(wg[0:KD])
    w1f = w1f.at[FMT:FMT + KD, blk(3)].set(wg[KD:2 * KD])
    w1f = w1f.at[STU:STU + KD, blk(3)].set(wg[2 * KD:3 * KD])
    # s: [s_emb, fmt, stu]
    ws = _posw(params["s_w1"])
    w1f = w1f.at[S:S + KD, blk(4)].set(ws[0:KD])
    w1f = w1f.at[FMT:FMT + KD, blk(4)].set(ws[KD:2 * KD])
    w1f = w1f.at[STU:STU + KD, blk(4)].set(ws[2 * KD:3 * KD])

    b1f = jnp.concatenate([params["th_b1"], params["a_b1"], params["b_b1"],
                           params["g_b1"], params["s_b1"]], axis=1)            # (1, 160)

    # --- fused second layer: block-diagonal (160, 13), plain Linear (no PosLinear) ---
    # output COLUMN order matches the packed output slab:
    #   [e_diff(1) | k_diff(5) | slip(1) | guess(1) | stat(5)]
    w2f = jnp.zeros((HF, HEAD_OUT), f32)
    w2f = w2f.at[blk(1), 0:1].set(params["a_w2"])                    # e_diff
    w2f = w2f.at[blk(2), 1:1 + KD].set(params["b_w2"])               # k_diff
    w2f = w2f.at[blk(4), 1 + KD:2 + KD].set(params["s_w2"])          # slip
    w2f = w2f.at[blk(3), 2 + KD:3 + KD].set(params["g_w2"])          # guess
    w2f = w2f.at[blk(0), 3 + KD:3 + 2 * KD].set(params["th_w2"])     # stat
    b2f = jnp.concatenate([params["a_b2"], params["b_b2"], params["s_b2"],
                           params["g_b2"], params["th_b2"]], axis=1)           # (1, 13)

    # --- prednet: PosLinear transform hoisted here; optional bf16 cast of weights ---
    p1w = _posw(params["p1_w"]).astype(matmul_dtype)
    p2w = _posw(params["p2_w"]).astype(matmul_dtype)
    p3w = _posw(params["p3_w"]).astype(matmul_dtype)

    return (w1f, b1f, w2f, b2f,
            p1w, params["p1_b"], p2w, params["p2_b"], p3w, params["p3_b"])


def _choose_tb(B, block_batch):
    TB = min(block_batch, _round_up(B, 8))
    TB = _round_up(max(TB, 8), 8)
    # v7x megacore: if the whole batch fits in a single tile but is large enough to split,
    # halve the tile so the ("parallel",) batch axis has work for BOTH TensorCores.
    # (No-op on v5e/v6e which have a single TC.)
    if B > 512 and _round_up(B, TB) // TB < 2:
        TB = _round_up((B + 1) // 2, 8)
    return TB


# ---------------------------------------------------------------------------
# Forward wrapper
# ---------------------------------------------------------------------------
def net_lsirt_forward(params, stu_id, input_exercise, inut_word, inut_format,
                      inut_section, inut_wordlen, inut_cefr, input_knowledge_point,
                      *, block_batch=1024, matmul_dtype=jnp.bfloat16):
    B = stu_id.shape[0]

    # ---- glue: gathers / one-hot (plain JAX), packed into one activation slab ----
    fmt_onehot = jax.nn.one_hot(inut_format, 5, dtype=jnp.float32)     # to_categorical(format, 5)
    stu_emb = params["student_emb"][stu_id]
    # one fused gather over the four word-indexed tables instead of four separate gathers
    word_tab = jnp.concatenate([params["e_difficulty"], params["k_difficulty"],
                                params["guess"], params["slip"]], axis=1)      # (word_n, 20)
    word_emb = word_tab[inut_word]                                             # (B, 20) = [e|k|g|s]
    kp = input_knowledge_point.astype(jnp.float32)
    # TODO(synk): skill_onehot (1900-wide), linskill() and q_embed(inut_word) are computed in
    # the PyTorch forward but never influence any returned output, so they are omitted.
    # TODO(synk): moving the gathers fully in-kernel (index tiles + VMEM-resident tables) would
    # remove the (B,35) HBM round trip; kept wrapper-side pending gather-lowering validation.

    act = jnp.concatenate([stu_emb, word_emb, fmt_onehot, kp], axis=1)         # (B, 35)

    # ---- batch tiling: TB rows per grid step, batch padded so TB | B_pad ----
    TB = _choose_tb(B, block_batch)
    B_pad = _round_up(B, TB)
    if B_pad != B:
        act = jnp.pad(act, ((0, B_pad - B), (0, 0)))

    fused = _fuse_params(params, matmul_dtype)

    grid = (B_pad // TB,)
    act_spec = pl.BlockSpec((TB, ACT_W), lambda i: (i, 0))
    out_spec = pl.BlockSpec((TB, OUT_W), lambda i: (i, 0))
    # weights/biases: full-array blocks, constant index_map -> VMEM-resident across grid steps
    w_specs = [pl.BlockSpec(w.shape, lambda i: (0, 0)) for w in fused]

    # advisory cost estimate for XLA scheduling
    flops_row = 2 * (X_W * HF + HF * HEAD_OUT + KD * P1 + P1 * P2 + P2 * 1)
    trans_row = HEAD_OUT + P1 + P2 + 1
    weight_bytes = sum(int(w.size) * w.dtype.itemsize for w in fused)
    cost = pl.CostEstimate(
        flops=flops_row * B_pad,
        transcendentals=trans_row * B_pad,
        bytes_accessed=(ACT_W + OUT_W) * 4 * B_pad + weight_bytes)

    packed = pl.pallas_call(
        net_lsirt_kernel,
        out_shape=jax.ShapeDtypeStruct((B_pad, OUT_W), jnp.float32),
        grid=grid,
        in_specs=[act_spec] + w_specs,
        out_specs=out_spec,
        compiler_params=pltpu.CompilerParams(
            dimension_semantics=("parallel",),
            vmem_limit_bytes=32 * 1024 * 1024),
        cost_estimate=cost,
    )(act, *fused)

    packed = packed[:B]
    output = packed[:, 0]
    e_diff = packed[:, 1]
    k_diff = packed[:, 2:7]
    slip_ad = packed[:, 7]
    guess_ad = packed[:, 8]
    stat_emb = packed[:, 9:14]

    return (
        output,
        e_diff,
        k_diff,
        slip_ad,
        guess_ad,
        input_exercise.reshape(-1),
        inut_word.reshape(-1),
        inut_format.reshape(-1),
        stu_id.reshape(-1),
        stat_emb,
    )


# ---------------------------------------------------------------------------
# Parameter init (mirrors the xavier-normal init of the torch module)
# ---------------------------------------------------------------------------
def init_params(key, student_n=20, word_n=50):
    keys = iter(jax.random.split(key, 48))

    def xav(fi, fo):
        std = (2.0 / (fi + fo)) ** 0.5
        return std * jax.random.normal(next(keys), (fi, fo), jnp.float32)

    def bias(n):
        return 0.01 * jax.random.normal(next(keys), (1, n), jnp.float32)

    p = {}
    # embeddings
    p["student_emb"] = xav(student_n, KD)
    p["k_difficulty"] = xav(word_n, KD)
    p["e_difficulty"] = xav(word_n, KD)
    p["guess"] = xav(word_n, KD)
    p["slip"] = xav(word_n, KD)
    # heads — weights stored as (in, out), i.e. transposed from PyTorch (out, in)
    p["a_w1"], p["a_b1"] = xav(NET_IN, H), bias(H)
    p["a_w2"], p["a_b2"] = xav(H, 1), bias(1)
    p["b_w1"], p["b_b1"] = xav(NET_IN, H), bias(H)
    p["b_w2"], p["b_b2"] = xav(H, KD), bias(KD)
    p["th_w1"], p["th_b1"] = xav(KD, H), bias(H)
    p["th_w2"], p["th_b2"] = xav(H, KD), bias(KD)
    p["g_w1"], p["g_b1"] = xav(NET_IN + KD, H), bias(H)
    p["g_w2"], p["g_b2"] = xav(H, 1), bias(1)
    p["s_w1"], p["s_b1"] = xav(NET_IN + KD, H), bias(H)
    p["s_w2"], p["s_b2"] = xav(H, 1), bias(1)
    # prednet
    p["p1_w"], p["p1_b"] = xav(KD, P1), bias(P1)
    p["p2_w"], p["p2_b"] = xav(P1, P2), bias(P2)
    p["p3_w"], p["p3_b"] = xav(P2, 1), bias(1)
    return p


# ---------------------------------------------------------------------------
# Pure-JAX reference (mirrors the PyTorch forward, eval mode, explicit concat)
# ---------------------------------------------------------------------------
def reference_forward(params, stu_id, inut_word, inut_format, kp):
    posw = lambda w: 2.0 * jnp.maximum(-w, 0.0) + w
    sig = jax.nn.sigmoid
    fmt = jax.nn.one_hot(inut_format, 5, dtype=jnp.float32)
    stu = params["student_emb"][stu_id]
    e_emb = params["e_difficulty"][inut_word]
    k_emb = params["k_difficulty"][inut_word]
    g_emb = params["guess"][inut_word]
    s_emb = params["slip"][inut_word]

    def head(x, w1, b1, w2, b2):
        h = jnp.maximum(x @ posw(w1) + b1, 0.0)
        return h @ w2 + b2

    stat = sig(head(stu, params["th_w1"], params["th_b1"], params["th_w2"], params["th_b2"]))
    e_diff = sig(head(jnp.concatenate([e_emb, fmt], axis=1),
                      params["a_w1"], params["a_b1"], params["a_w2"], params["a_b2"]))
    k_diff = sig(head(jnp.concatenate([k_emb, fmt], axis=1),
                      params["b_w1"], params["b_b1"], params["b_w2"], params["b_b2"]))
    guess_ad = sig(head(jnp.concatenate([g_emb, fmt, stu], axis=1),
                        params["g_w1"], params["g_b1"], params["g_w2"], params["g_b2"]))
    slip_ad = sig(head(jnp.concatenate([s_emb, fmt, stu], axis=1),
                       params["s_w1"], params["s_b1"], params["s_w2"], params["s_b2"]))
    x = e_diff * (stat - k_diff) * kp
    x = sig(x @ posw(params["p1_w"]) + params["p1_b"])
    x = sig(x @ posw(params["p2_w"]) + params["p2_b"])
    out_p = sig(x @ posw(params["p3_w"]) + params["p3_b"])
    output = guess_ad + (slip_ad - guess_ad) * out_p
    return (output.reshape(-1), e_diff.reshape(-1), k_diff, slip_ad.reshape(-1),
            guess_ad.reshape(-1), stat)


if __name__ == "__main__":
    key = jax.random.PRNGKey(0)
    pkey, dkey = jax.random.split(key)
    STUDENT_N, WORD_N, B = 20, 50, 8

    params = init_params(pkey, student_n=STUDENT_N, word_n=WORD_N)

    def make_inputs(k, b):
        ks = jax.random.split(k, 8)
        return dict(
            stu_id=jax.random.randint(ks[0], (b,), 0, STUDENT_N),
            input_exercise=jax.random.randint(ks[1], (b,), 0, 30),
            inut_word=jax.random.randint(ks[2], (b,), 0, WORD_N),
            inut_format=jax.random.randint(ks[3], (b,), 0, 5),
            inut_section=jax.random.randint(ks[4], (b,), 0, 4),      # unused by forward
            inut_wordlen=jax.random.randint(ks[5], (b,), 1, 10),     # unused by forward
            inut_cefr=jax.random.randint(ks[6], (b,), 0, 6),         # unused by forward
            input_knowledge_point=jax.random.uniform(ks[7], (b, KD), jnp.float32),
        )

    def check(outs, inputs, atol, rtol):
        ref = reference_forward(params, inputs["stu_id"], inputs["inut_word"],
                                inputs["inut_format"], inputs["input_knowledge_point"])
        got = (outs[0], outs[1], outs[2], outs[3], outs[4], outs[9])
        for g, r in zip(got, ref):
            assert g.shape == r.shape, (g.shape, r.shape)
            assert bool(jnp.allclose(g, r, atol=atol, rtol=rtol)), "mismatch vs reference"

    # small deterministic batch (single grid step), exact f32 path
    inp = make_inputs(dkey, B)
    outs = jax.block_until_ready(
        net_lsirt_forward(params, **inp, matmul_dtype=jnp.float32))
    check(outs, inp, 1e-5, 1e-5)

    # larger batch exercises the batch grid + padding (384 padded rows, 3 grid steps of 128)
    inp2 = make_inputs(jax.random.fold_in(dkey, 1), 300)
    outs2 = jax.block_until_ready(
        net_lsirt_forward(params, **inp2, block_batch=128, matmul_dtype=jnp.float32))
    check(outs2, inp2, 1e-5, 1e-5)

    # default fast path: block_batch=1024 + bf16 prednet (f32 accumulation), relaxed tolerance
    outs3 = jax.block_until_ready(net_lsirt_forward(params, **inp2))
    check(outs3, inp2, 3e-2, 3e-2)

    # megacore-aware TB split path (B>512 -> 2 tiles even with block_batch=1024)
    inp3 = make_inputs(jax.random.fold_in(dkey, 2), 600)
    outs4 = jax.block_until_ready(net_lsirt_forward(params, **inp3))
    check(outs4, inp3, 3e-2, 3e-2)

    print("KERNEL_OK")
</pallas_src>

<mosaic_0001>
module attributes {stable_mosaic.version = 11 : i64} {
  func.func @net_lsirt_kernel(%arg0: i32, %arg1: memref<8x35xf32, #tpu.memory_space<vmem>>, %arg2: memref<30x160xf32, #tpu.memory_space<vmem>>, %arg3: memref<1x160xf32, #tpu.memory_space<vmem>>, %arg4: memref<160x13xf32, #tpu.memory_space<vmem>>, %arg5: memref<1x13xf32, #tpu.memory_space<vmem>>, %arg6: memref<5x512xf32, #tpu.memory_space<vmem>>, %arg7: memref<1x512xf32, #tpu.memory_space<vmem>>, %arg8: memref<512x256xf32, #tpu.memory_space<vmem>>, %arg9: memref<1x256xf32, #tpu.memory_space<vmem>>, %arg10: memref<256x1xf32, #tpu.memory_space<vmem>>, %arg11: memref<1x1xf32, #tpu.memory_space<vmem>>, %arg12: memref<8x16xf32, #tpu.memory_space<vmem>>) attributes {dimension_semantics = [#tpu.dimension_semantics<parallel>], iteration_bounds = array<i64: 1>, scalar_prefetch = 0 : i64, scratch_operands = 0 : i64, tpu.core_type = #tpu.core_type<tc>, window_params = [{transform_indices = @transform_0, window_bounds = array<i64: 8, 35>}, {pipeline_mode = #tpu.pipeline_mode<synchronous>, transform_indices = @transform_1, window_bounds = array<i64: 30, 160>}, {pipeline_mode = #tpu.pipeline_mode<synchronous>, transform_indices = @transform_2, window_bounds = array<i64: 1, 160>}, {pipeline_mode = #tpu.pipeline_mode<synchronous>, transform_indices = @transform_3, window_bounds = array<i64: 160, 13>}, {pipeline_mode = #tpu.pipeline_mode<synchronous>, transform_indices = @transform_4, window_bounds = array<i64: 1, 13>}, {pipeline_mode = #tpu.pipeline_mode<synchronous>, transform_indices = @transform_5, window_bounds = array<i64: 5, 512>}, {pipeline_mode = #tpu.pipeline_mode<synchronous>, transform_indices = @transform_6, window_bounds = array<i64: 1, 512>}, {pipeline_mode = #tpu.pipeline_mode<synchronous>, transform_indices = @transform_7, window_bounds = array<i64: 512, 256>}, {pipeline_mode = #tpu.pipeline_mode<synchronous>, transform_indices = @transform_8, window_bounds = array<i64: 1, 256>}, {pipeline_mode = #tpu.pipeline_mode<synchronous>, transform_indices = @transform_9, window_bounds = array<i64: 256, 1>}, {pipeline_mode = #tpu.pipeline_mode<synchronous>, transform_indices = @transform_10, window_bounds = array<i64: 1, 1>}, {transform_indices = @transform_11, window_bounds = array<i64: 8, 16>}]} {
    %c0 = arith.constant 0 : index
    %c0_0 = arith.constant 0 : index
    %0 = vector.load %arg1[%c0, %c0_0] : memref<8x35xf32, #tpu.memory_space<vmem>>, vector<8x30xf32>
    %c0_1 = arith.constant 0 : index
    %c30 = arith.constant 30 : index
    %1 = vector.load %arg1[%c0_1, %c30] : memref<8x35xf32, #tpu.memory_space<vmem>>, vector<8x5xf32>
    %c0_2 = arith.constant 0 : index
    %c0_3 = arith.constant 0 : index
    %2 = vector.load %arg2[%c0_2, %c0_3] : memref<30x160xf32, #tpu.memory_space<vmem>>, vector<30x160xf32>
    %cst = arith.constant dense<0.000000e+00> : vector<8x160xf32>
    %3 = tpu.matmul %0, %2, %cst {dimension_numbers = #tpu.dot_dimension_numbers<[1], [0], [0], [1], [0, 0, 1, 1], [], []>} : vector<8x30xf32>, vector<30x160xf32>, vector<8x160xf32> -> vector<8x160xf32>
    %c0_4 = arith.constant 0 : index
    %c0_5 = arith.constant 0 : index
    %4 = vector.load %arg3[%c0_4, %c0_5] : memref<1x160xf32, #tpu.memory_space<vmem>>, vector<1x160xf32>
    %5 = vector.broadcast %4 : vector<1x160xf32> to vector<8x160xf32>
    %6 = arith.addf %3, %5 : vector<8x160xf32>
    %cst_6 = arith.constant 0.000000e+00 : f32
    %7 = vector.broadcast %cst_6 : f32 to vector<8x160xf32>
    %8 = arith.maximumf %6, %7 : vector<8x160xf32>
    %c0_7 = arith.constant 0 : index
    %c0_8 = arith.constant 0 : index
    %9 = vector.load %arg4[%c0_7, %c0_8] : memref<160x13xf32, #tpu.memory_space<vmem>>, vector<160x13xf32>
    %cst_9 = arith.constant dense<0.000000e+00> : vector<8x13xf32>
    %10 = tpu.matmul %8, %9, %cst_9 {dimension_numbers = #tpu.dot_dimension_numbers<[1], [0], [0], [1], [0, 0, 1, 1], [], []>} : vector<8x160xf32>, vector<160x13xf32>, vector<8x13xf32> -> vector<8x13xf32>
    %c0_10 = arith.constant 0 : index
    %c0_11 = arith.constant 0 : index
    %11 = vector.load %arg5[%c0_10, %c0_11] : memref<1x13xf32, #tpu.memory_space<vmem>>, vector<1x13xf32>
    %12 = vector.broadcast %11 : vector<1x13xf32> to vector<8x13xf32>
    %13 = arith.addf %10, %12 : vector<8x13xf32>
    %14 = arith.negf %13 : vector<8x13xf32>
    %15 = math.exp %14 : vector<8x13xf32>
    %cst_12 = arith.constant 1.000000e+00 : f32
    %16 = vector.broadcast %cst_12 : f32 to vector<8x13xf32>
    %17 = arith.addf %16, %15 : vector<8x13xf32>
    %18 = arith.divf %16, %17 : vector<8x13xf32>
    %19 = vector.extract_strided_slice %18 {offsets = [0, 0], sizes = [8, 1], strides = [1, 1]} : vector<8x13xf32> to vector<8x1xf32>
    %20 = vector.extract_strided_slice %18 {offsets = [0, 1], sizes = [8, 5], strides = [1, 1]} : vector<8x13xf32> to vector<8x5xf32>
    %21 = vector.extract_strided_slice %18 {offsets = [0, 6], sizes = [8, 1], strides = [1, 1]} : vector<8x13xf32> to vector<8x1xf32>
    %22 = vector.extract_strided_slice %18 {offsets = [0, 7], sizes = [8, 1], strides = [1, 1]} : vector<8x13xf32> to vector<8x1xf32>
    %23 = vector.extract_strided_slice %18 {offsets = [0, 8], sizes = [8, 5], strides = [1, 1]} : vector<8x13xf32> to vector<8x5xf32>
    %24 = arith.subf %23, %20 : vector<8x5xf32>
    %25 = vector.broadcast %19 : vector<8x1xf32> to vector<8x5xf32>
    %26 = arith.mulf %25, %24 : vector<8x5xf32>
    %27 = arith.mulf %26, %1 : vector<8x5xf32>
    %c0_13 = arith.constant 0 : index
    %c0_14 = arith.constant 0 : index
    %28 = vector.load %arg6[%c0_13, %c0_14] : memref<5x512xf32, #tpu.memory_space<vmem>>, vector<5x512xf32>
    %cst_15 = arith.constant dense<0.000000e+00> : vector<8x512xf32>
    %29 = tpu.matmul %27, %28, %cst_15 {dimension_numbers = #tpu.dot_dimension_numbers<[1], [0], [0], [1], [0, 0, 1, 1], [], []>} : vector<8x5xf32>, vector<5x512xf32>, vector<8x512xf32> -> vector<8x512xf32>
    %c0_16 = arith.constant 0 : index
    %c0_17 = arith.constant 0 : index
    %30 = vector.load %arg7[%c0_16, %c0_17] : memref<1x512xf32, #tpu.memory_space<vmem>>, vector<1x512xf32>
    %31 = vector.broadcast %30 : vector<1x512xf32> to vector<8x512xf32>
    %32 = arith.addf %29, %31 : vector<8x512xf32>
    %33 = arith.negf %32 : vector<8x512xf32>
    %34 = math.exp %33 : vector<8x512xf32>
    %cst_18 = arith.constant 1.000000e+00 : f32
    %35 = vector.broadcast %cst_18 : f32 to vector<8x512xf32>
    %36 = arith.addf %35, %34 : vector<8x512xf32>
    %37 = arith.divf %35, %36 : vector<8x512xf32>
    %c0_19 = arith.constant 0 : index
    %c0_20 = arith.constant 0 : index
    %38 = vector.load %arg8[%c0_19, %c0_20] : memref<512x256xf32, #tpu.memory_space<vmem>>, vector<512x256xf32>
    %cst_21 = arith.constant dense<0.000000e+00> : vector<8x256xf32>
    %39 = tpu.matmul %37, %38, %cst_21 {dimension_numbers = #tpu.dot_dimension_numbers<[1], [0], [0], [1], [0, 0, 1, 1], [], []>} : vector<8x512xf32>, vector<512x256xf32>, vector<8x256xf32> -> vector<8x256xf32>
    %c0_22 = arith.constant 0 : index
    %c0_23 = arith.constant 0 : index
    %40 = vector.load %arg9[%c0_22, %c0_23] : memref<1x256xf32, #tpu.memory_space<vmem>>, vector<1x256xf32>
    %41 = vector.broadcast %40 : vector<1x256xf32> to vector<8x256xf32>
    %42 = arith.addf %39, %41 : vector<8x256xf32>
    %43 = arith.negf %42 : vector<8x256xf32>
    %44 = math.exp %43 : vector<8x256xf32>
    %cst_24 = arith.constant 1.000000e+00 : f32
    %45 = vector.broadcast %cst_24 : f32 to vector<8x256xf32>
    %46 = arith.addf %45, %44 : vector<8x256xf32>
    %47 = arith.divf %45, %46 : vector<8x256xf32>
    %c0_25 = arith.constant 0 : index
    %c0_26 = arith.constant 0 : index
    %48 = vector.load %arg10[%c0_25, %c0_26] : memref<256x1xf32, #tpu.memory_space<vmem>>, vector<256x1xf32>
    %cst_27 = arith.constant dense<0.000000e+00> : vector<8x1xf32>
    %49 = tpu.matmul %47, %48, %cst_27 {dimension_numbers = #tpu.dot_dimension_numbers<[1], [0], [0], [1], [0, 0, 1, 1], [], []>} : vector<8x256xf32>, vector<256x1xf32>, vector<8x1xf32> -> vector<8x1xf32>
    %c0_28 = arith.constant 0 : index
    %c0_29 = arith.constant 0 : index
    %50 = vector.load %arg11[%c0_28, %c0_29] : memref<1x1xf32, #tpu.memory_space<vmem>>, vector<1x1xf32>
    %51 = vector.broadcast %50 : vector<1x1xf32> to vector<8x1xf32>
    %52 = arith.addf %49, %51 : vector<8x1xf32>
    %53 = arith.negf %52 : vector<8x1xf32>
    %54 = math.exp %53 : vector<8x1xf32>
    %cst_30 = arith.constant 1.000000e+00 : f32
    %55 = vector.broadcast %cst_30 : f32 to vector<8x1xf32>
    %56 = arith.addf %55, %54 : vector<8x1xf32>
    %57 = arith.divf %55, %56 : vector<8x1xf32>
    %58 = arith.subf %21, %22 : vector<8x1xf32>
    %59 = arith.mulf %58, %57 : vector<8x1xf32>
    %60 = arith.addf %22, %59 : vector<8x1xf32>
    %cst_31 = arith.constant 0.000000e+00 : f32
    %61 = vector.broadcast %cst_31 : f32 to vector<8x2xf32>
    %62 = tpu.concatenate %60, %18, %61 in 1 : vector<8x1xf32>, vector<8x13xf32>, vector<8x2xf32> -> vector<8x16xf32>
    %c0_32 = arith.constant 0 : index
    %c0_33 = arith.constant 0 : index
    %63 = vector.load %arg12[%c0_32, %c0_33] : memref<8x16xf32, #tpu.memory_space<vmem>>, vector<8x16xf32>
    tpu.vector_store %arg12[%c0_32, %c0_33], %62 {strides = array<i32>} : memref<8x16xf32, #tpu.memory_space<vmem>>, vector<8x16xf32>,
    return
  }
  func.func @transform_0(%arg0: i32) -> (i32, i32) {
    %c0_i32 = arith.constant 0 : i32
    %c0_i32_0 = arith.constant 0 : i32
    return %arg0, %c0_i32 : i32, i32
  }
  func.func @transform_1(%arg0: i32) -> (i32, i32) {
    %c0_i32 = arith.constant 0 : i32
    %c0_i32_0 = arith.constant 0 : i32
    %c0_i32_1 = arith.constant 0 : i32
    return %c0_i32, %c0_i32_0 : i32, i32
  }
  func.func @transform_2(%arg0: i32) -> (i32, i32) {
    %c0_i32 = arith.constant 0 : i32
    %c0_i32_0 = arith.constant 0 : i32
    %c0_i32_1 = arith.constant 0 : i32
    return %c0_i32, %c0_i32_0 : i32, i32
  }
  func.func @transform_3(%arg0: i32) -> (i32, i32) {
    %c0_i32 = arith.constant 0 : i32
    %c0_i32_0 = arith.constant 0 : i32
    %c0_i32_1 = arith.constant 0 : i32
    return %c0_i32, %c0_i32_0 : i32, i32
  }
  func.func @transform_4(%arg0: i32) -> (i32, i32) {
    %c0_i32 = arith.constant 0 : i32
    %c0_i32_0 = arith.constant 0 : i32
    %c0_i32_1 = arith.constant 0 : i32
    return %c0_i32, %c0_i32_0 : i32, i32
  }
  func.func @transform_5(%arg0: i32) -> (i32, i32) {
    %c0_i32 = arith.constant 0 : i32
    %c0_i32_0 = arith.constant 0 : i32
    %c0_i32_1 = arith.constant 0 : i32
    return %c0_i32, %c0_i32_0 : i32, i32
  }
  func.func @transform_6(%arg0: i32) -> (i32, i32) {
    %c0_i32 = arith.constant 0 : i32
    %c0_i32_0 = arith.constant 0 : i32
    %c0_i32_1 = arith.constant 0 : i32
    return %c0_i32, %c0_i32_0 : i32, i32
  }
  func.func @transform_7(%arg0: i32) -> (i32, i32) {
    %c0_i32 = arith.constant 0 : i32
    %c0_i32_0 = arith.constant 0 : i32
    %c0_i32_1 = arith.constant 0 : i32
    return %c0_i32, %c0_i32_0 : i32, i32
  }
  func.func @transform_8(%arg0: i32) -> (i32, i32) {
    %c0_i32 = arith.constant 0 : i32
    %c0_i32_0 = arith.constant 0 : i32
    %c0_i32_1 = arith.constant 0 : i32
    return %c0_i32, %c0_i32_0 : i32, i32
  }
  func.func @transform_9(%arg0: i32) -> (i32, i32) {
    %c0_i32 = arith.constant 0 : i32
    %c0_i32_0 = arith.constant 0 : i32
    %c0_i32_1 = arith.constant 0 : i32
    return %c0_i32, %c0_i32_0 : i32, i32
  }
  func.func @transform_10(%arg0: i32) -> (i32, i32) {
    %c0_i32 = arith.constant 0 : i32
    %c0_i32_0 = arith.constant 0 : i32
    %c0_i32_1 = arith.constant 0 : i32
    return %c0_i32, %c0_i32_0 : i32, i32
  }
  func.func @transform_11(%arg0: i32) -> (i32, i32) {
    %c0_i32 = arith.constant 0 : i32
    %c0_i32_0 = arith.constant 0 : i32
    return %arg0, %c0_i32 : i32, i32
  }
}

</mosaic_0001>

<llo_original>
// kernel: tpu_custom_call.1
$region0: #{tpu_custom_call.1}
  #allocation0 [shape = 'u32[]', space=smem, size = 0x4, offset = 0x4, fixed_abs, tag = 'smem constant byte address 0x4 - core index']
  #allocation1 [shape = 'u32[144,128]{1,0:T(1,128)}', space=vmem, size = 0x12000, scoped, tag = 'internal scratch']
  #allocation2 [shape = 'f32[1,1]{1,0:T(1,128)S(1)}', space=vmem, size = 0x200, scoped, tag = 'scoped memory for tpu_custom_call.1']
  %s0 = inlined_call_operand.vmem [shape: f32[8,35], index: 0, kind: input, shape index: {}]
  %s1 = inlined_call_operand.vmem [shape: f32[30,160], index: 1, kind: input, shape index: {}]
  %s2 = inlined_call_operand.vmem [shape: f32[1,160], index: 2, kind: input, shape index: {}]
  %s3 = inlined_call_operand.vmem [shape: f32[160,13], index: 3, kind: input, shape index: {}]
  %s4 = inlined_call_operand.vmem [shape: f32[1,13], index: 4, kind: input, shape index: {}]
  %s5 = inlined_call_operand.vmem [shape: f32[5,512], index: 5, kind: input, shape index: {}]
  %s6 = inlined_call_operand.vmem [shape: f32[1,512], index: 6, kind: input, shape index: {}]
  %s7 = inlined_call_operand.hbm [shape: f32[512,256], index: 7, kind: input, shape index: {}]
  %s8 = inlined_call_operand.vmem [shape: f32[1,256], index: 8, kind: input, shape index: {}]
  %s9 = inlined_call_operand.vmem [shape: f32[256,1], index: 9, kind: input, shape index: {}]
  %s10 = inlined_call_operand.<no memory space> [shape: f32[1,1], index: 10, kind: input, shape index: {}]
  %s11 = inlined_call_operand.hbm [shape: f32[8,16], index: 11, kind: output, shape index: {}]
  %s12 = sld [smem:[#allocation0]]
  $region58: #{tpu_custom_call.1} parent=0
    _
  %s14 = ssub.s32 1, %s12
  %s15 = scalar_select 0, %s14, %s12
  %v16 = vstv %s10
  %17 = vst [vmem:[#allocation2] sm:$0x1] %v16
  $region1: #{tpu_custom_call.1} parent=0
    #allocation3 [shape = 'u8[524288]{0}', space=vmem, size = 0x80000, scoped, tag = 'input window, operand 7, single buffered']
    #allocation4 [shape = 's32[1]{0}', space=sflag, size = 0x4, scoped, tag = 'scoped memory for tpu_custom_call.1']
    #allocation5 [shape = 's32[1]{0}', space=sflag, size = 0x4, scoped, tag = 'scoped memory for tpu_custom_call.1']
    #allocation6 [shape = 'u8[4096]{0}', space=vmem, size = 0x1000, scoped, tag = 'output window, operand 0, single buffered']
    %18 = vsyncpa [#allocation4], 0
    %19 = vsyncpa [#allocation5], 0
    // Predicated region
    $region2: #{tpu_custom_call.1} parent=1 // pred_check
      _
    $region3: #{tpu_custom_call.1} parent=1 // pred_check_branch
      %21 = sbr.rel (0) target = $region5
    $region4: #{tpu_custom_call.1} parent=1 // pred_region
      _
    $region5: #{tpu_custom_call.1} parent=1 // pred_fallthru
      _
    // Predicated region
    $region6: #{tpu_custom_call.1} parent=1 // pred_check
      _
    $region7: #{tpu_custom_call.1} parent=1 // pred_check_branch
      %23 = sbr.rel (0) target = $region9
    $region8: #{tpu_custom_call.1} parent=1 // pred_region
      _
    $region9: #{tpu_custom_call.1} parent=1 // pred_fallthru
      _
    // Predicated region
    $region10: #{tpu_custom_call.1} parent=1 // pred_check
      _
    $region11: #{tpu_custom_call.1} parent=1 // pred_check_branch
      %25 = sbr.rel (0) target = $region13
    $region12: #{tpu_custom_call.1} parent=1 // pred_region
      _
    $region13: #{tpu_custom_call.1} parent=1 // pred_fallthru
      _
    // Predicated region
    $region14: #{tpu_custom_call.1} parent=1 // pred_check
      _
    $region15: #{tpu_custom_call.1} parent=1 // pred_check_branch
      %27 = sbr.rel (0) target = $region17
    $region16: #{tpu_custom_call.1} parent=1 // pred_region
      _
    $region17: #{tpu_custom_call.1} parent=1 // pred_fallthru
      _
    // Predicated region
    $region18: #{tpu_custom_call.1} parent=1 // pred_check
      _
    $region19: #{tpu_custom_call.1} parent=1 // pred_check_branch
      %29 = sbr.rel (0) target = $region21
    $region20: #{tpu_custom_call.1} parent=1 // pred_region
      _
    $region21: #{tpu_custom_call.1} parent=1 // pred_fallthru
      _
    // Predicated region
    $region22: #{tpu_custom_call.1} parent=1 // pred_check
      _
    $region23: #{tpu_custom_call.1} parent=1 // pred_check_branch
      %31 = sbr.rel (0) target = $region25
    $region24: #{tpu_custom_call.1} parent=1 // pred_region
      _
    $region25: #{tpu_custom_call.1} parent=1 // pred_fallthru
      _
    // Predicated region
    $region26: #{tpu_custom_call.1} parent=1 // pred_check
      _
    $region27: #{tpu_custom_call.1} parent=1 // pred_check_branch
      %33 = sbr.rel (0) target = $region29
    $region28: #{tpu_custom_call.1} parent=1 // pred_region
      _
    $region29: #{tpu_custom_call.1} parent=1 // pred_fallthru
      _
    // Predicated region
    $region30: #{tpu_custom_call.1} parent=1 // pred_check
      _
    $region31: #{tpu_custom_call.1} parent=1 // pred_check_branch
      %35 = sbr.rel (0) target = $region33
    $region32: #{tpu_custom_call.1} parent=1 // pred_region
      %s37 = ssub.s32 16384, 16384
      %38 = vsyncadd [#allocation4], %s37
      %s39 = sshll.u32 [#allocation3], 4
      %s40 = int_to_ptr.vmem [resolvable:$true] %s39
      %45 = dma.hbm_to_vmem [thread:$0]  %s7, 16384, %s40, [#allocation4], 256, 256, 16
    $region33: #{tpu_custom_call.1} parent=1 // pred_fallthru
      _
    // Predicated region
    $region34: #{tpu_custom_call.1} parent=1 // pred_check
      _
    $region35: #{tpu_custom_call.1} parent=1 // pred_check_branch
      %47 = sbr.rel (0) target = $region37
    $region36: #{tpu_custom_call.1} parent=1 // pred_region
      _
    $region37: #{tpu_custom_call.1} parent=1 // pred_fallthru
      _
    // Predicated region
    $region38: #{tpu_custom_call.1} parent=1 // pred_check
      _
    $region39: #{tpu_custom_call.1} parent=1 // pred_check_branch
      %49 = sbr.rel (0) target = $region41
    $region40: #{tpu_custom_call.1} parent=1 // pred_region
      _
    $region41: #{tpu_custom_call.1} parent=1 // pred_fallthru
      _
    // Predicated region
    $region42: #{tpu_custom_call.1} parent=1 // pred_check
      _
    $region43: #{tpu_custom_call.1} parent=1 // pred_check_branch
      %51 = sbr.rel (0) target = $region45
    $region44: #{tpu_custom_call.1} parent=1 // pred_region
      _
    $region45: #{tpu_custom_call.1} parent=1 // pred_fallthru
      _
    // Predicated region
    $region46: #{tpu_custom_call.1} parent=1 // pred_check
      _
    $region47: #{tpu_custom_call.1} parent=1 // pred_check_branch
      %53 = sbr.rel (0) target = $region49
    $region48: #{tpu_custom_call.1} parent=1 // pred_region
      %54 = dma.done [#allocation4], 16384
    $region49: #{tpu_custom_call.1} parent=1 // pred_fallthru
      _
    %v55 = vld [vmem:[%s0] sm:$0xff]
    %v56 = vld [vmem:[%s1] sm:$0xff]
    %v57 = vld [vmem:[%s1 + $0x8] sm:$0xff]
    %v58 = vld [vmem:[%s1 + $0x10] sm:$0xff]
    %v59 = vld [vmem:[%s1 + $0x18] sm:$0xff]
    %v60 = vld [vmem:[%s1 + $0x20] sm:$0xff]
    %v61 = vld [vmem:[%s1 + $0x28] sm:$0xff]
    %v62 = vld [vmem:[%s1 + $0x30] sm:$0x3f]
    %v63 = vld [vmem:[%s1 + $0x38] sm:$0x3f]
    %v64 = vld [vmem:[%s2] sm:$0x3]
    %v66 = vlaneseq
    %v67 = vshrl.u32 %v66, 7
    %v68 = vsub.s32 0, %v67
    %v69 = vrot.slane %v64, %v68
    %v70 = vlaneseq
    %v71 = vshrl.u32 %v70, 7
    %v72 = vsub.s32 1, %v71
    %v73 = vrot.slane %v64, %v72
    %vm76 = vcmask 244736
    %v78 = vsel %vm76, %v55, 0
    %vm80 = vcmask 1045504
    %v82 = vsel %vm80, %v62, 0
    %v85 = vsel %vm80, %v63, 0
    %87 = vmatprep.subr.mxu0 %v57
    %88 = vmatpush1.msra.mxu0 %v56
    %89 = vmatprep.subr.mxu0 %v59
    %90 = vmatpush1.msra.mxu0 %v58
    %91 = vmatprep.subr.mxu0 %v61
    %92 = vmatpush1.msra.mxu0 %v60
    %93 = vmatprep.subr.mxu0 %v85
    %94 = vmatpush1.msra.mxu0 %v82
    %95 = vmatprep.subr.mxu0 0.0
    %96 = vmatpush1.msra.mxu0 0.0
    %97 = vmatprep.subr.mxu0 0.0
    %98 = vmatpush1.msra.mxu0 0.0
    %99 = vmatprep.subr.mxu0 0.0
    %100 = vmatpush1.msra.mxu0 0.0
    %101 = vmatprep.subr.mxu0 0.0
    %102 = vmatpush1.msra.mxu0 0.0
    %103 = vmatprep.subr.mxu0 0.0
    %104 = vmatpush1.msra.mxu0 0.0
    %105 = vmatprep.subr.mxu0 0.0
    %106 = vmatpush1.msra.mxu0 0.0
    %107 = vmatprep.subr.mxu0 0.0
    %108 = vmatpush1.msra.mxu0 0.0
    %109 = vmatprep.subr.mxu0 0.0
    %110 = vmatpush1.msra.mxu0 0.0
    %111 = vmatprep.subr.mxu0 0.0
    %112 = vmatpush1.msra.mxu0 0.0
    %113 = vmatprep.subr.mxu0 0.0
    %114 = vmatpush1.msra.mxu0 0.0
    %115 = vmatprep.subr.mxu0 0.0
    %116 = vmatpush1.msra.mxu0 0.0
    %117 = vmatprep.subr.mxu0 0.0
    %118 = vmatpush1.msra.mxu0 0.0
    %119 = vmatprep.subr.mxu0 0.0
    %120 = vmatpush1.msra.mxu0 0.0
    %121 = vmatprep.subr.mxu0 0.0
    %122 = vmatpush1.msra.mxu0 0.0
    %123 = vmatprep.subr.mxu0 0.0
    %124 = vmatpush1.msra.mxu0 0.0
    %125 = vmatprep.subr.mxu0 0.0
    %126 = vmatpush1.msra.mxu0 0.0
    %127 = vmatprep.subr.mxu0 0.0
    %128 = vmatpush1.msra.mxu0 0.0
    %129 = vmatprep.subr.mxu0 0.0
    %130 = vmatpush1.msra.mxu0 0.0
    %131 = vmatprep.subr.mxu0 0.0
    %132 = vmatpush1.msra.mxu0 0.0
    %133 = vmatprep.subr.mxu0 0.0
    %134 = vmatpush1.msra.mxu0 0.0
    %135 = vmatprep.subr.mxu0 0.0
    %136 = vmatpush1.msra.mxu0 0.0
    %137 = vmatprep.subr.mxu0 0.0
    %138 = vmatpush1.msra.mxu0 0.0
    %139 = vmatprep.subr.mxu0 0.0
    %140 = vmatpush1.msra.mxu0 0.0
    %141 = vmatprep.subr.mxu0 0.0
    %142 = vmatpush1.msra.mxu0 0.0
    %143 = vmatprep.subr.mxu0 0.0
    %144 = vmatpush1.msra.mxu0 0.0
    %145 = vmatprep.subr.mxu0 0.0
    %146 = vmatpush1.msra.mxu0 0.0
    %147 = vmatprep.subr.mxu0 0.0
    %148 = vmatpush1.msra.mxu0 0.0
    %149 = vmatprep.subr.mxu0 0.0
    %150 = vmatpush1.msra.mxu0 0.0
    %151 = vmatprep.mubr.f32.mxu0 0.0
    %152 = vmatmul.mubr.f32.gmra.mrb[0].mxu0 %v78
    %v153 = vpop.f32.mrb[0].mxu0
    %v154 = vadd.f32 %v69, %v153
    %v155 = vpop.f32.mrb[0].mxu0
    %v156 = vadd.f32 %v73, %v155
    %157 = vdwg.mxu0
    %v158 = vmax.f32 %v154, 0.0
    %v159 = vmax.f32 %v156, 0.0
    %v160 = vld [vmem:[%s3] sm:$0xff]
    %v161 = vld [vmem:[%s3 + $0x8] sm:$0xff]
    %v162 = vld [vmem:[%s3 + $0x10] sm:$0xff]
    %v163 = vld [vmem:[%s3 + $0x18] sm:$0xff]
    %v164 = vld [vmem:[%s3 + $0x20] sm:$0xff]
    %v165 = vld [vmem:[%s3 + $0x28] sm:$0xff]
    %v166 = vld [vmem:[%s3 + $0x30] sm:$0xff]
    %v167 = vld [vmem:[%s3 + $0x38] sm:$0xff]
    %v168 = vld [vmem:[%s3 + $0x40] sm:$0xff]
    %v169 = vld [vmem:[%s3 + $0x48] sm:$0xff]
    %v170 = vld [vmem:[%s3 + $0x50] sm:$0xff]
    %v171 = vld [vmem:[%s3 + $0x58] sm:$0xff]
    %v172 = vld [vmem:[%s3 + $0x60] sm:$0xff]
    %v173 = vld [vmem:[%s3 + $0x68] sm:$0xff]
    %v174 = vld [vmem:[%s3 + $0x70] sm:$0xff]
    %v175 = vld [vmem:[%s3 + $0x78] sm:$0xff]
    %v176 = vld [vmem:[%s3 + $0x80] sm:$0xff]
    %v177 = vld [vmem:[%s3 + $0x88] sm:$0xff]
    %v178 = vld [vmem:[%s3 + $0x90] sm:$0xff]
    %v179 = vld [vmem:[%s3 + $0x98] sm:$0xff]
    %v180 = vld [vmem:[%s4] sm:$0x1]
    %v182 = vlaneseq
    %v183 = vshrl.u32 %v182, 7
    %v184 = vsub.s32 0, %v183
    %v185 = vrot.slane %v180, %v184
    %vm187 = vcmask 261120
    %v189 = vsel %vm187, %v159, 0
    %191 = vmatprep.subr.mxu0 0.0
    %192 = vmatpush1.msra.mxu0 %v160
    %193 = vmatprep.subr.mxu0 0.0
    %194 = vmatpush1.msra.mxu0 %v161
    %195 = vmatprep.subr.mxu0 0.0
    %196 = vmatpush1.msra.mxu0 %v162
    %197 = vmatprep.subr.mxu0 0.0
    %198 = vmatpush1.msra.mxu0 %v163
    %199 = vmatprep.subr.mxu0 0.0
    %200 = vmatpush1.msra.mxu0 %v164
    %201 = vmatprep.subr.mxu0 0.0
    %202 = vmatpush1.msra.mxu0 %v165
    %203 = vmatprep.subr.mxu0 0.0
    %204 = vmatpush1.msra.mxu0 %v166
    %205 = vmatprep.subr.mxu0 0.0
    %206 = vmatpush1.msra.mxu0 %v167
    %207 = vmatprep.subr.mxu0 0.0
    %208 = vmatpush1.msra.mxu0 %v168
    %209 = vmatprep.subr.mxu0 0.0
    %210 = vmatpush1.msra.mxu0 %v169
    %211 = vmatprep.subr.mxu0 0.0
    %212 = vmatpush1.msra.mxu0 %v170
    %213 = vmatprep.subr.mxu0 0.0
    %214 = vmatpush1.msra.mxu0 %v171
    %215 = vmatprep.subr.mxu0 0.0
    %216 = vmatpush1.msra.mxu0 %v172
    %217 = vmatprep.subr.mxu0 0.0
    %218 = vmatpush1.msra.mxu0 %v173
    %219 = vmatprep.subr.mxu0 0.0
    %220 = vmatpush1.msra.mxu0 %v174
    %221 = vmatprep.subr.mxu0 0.0
    %222 = vmatpush1.msra.mxu0 %v175
    %223 = vmatprep.subr.mxu0 0.0
    %224 = vmatpush1.msra.mxu0 %v176
    %225 = vmatprep.subr.mxu0 0.0
    %226 = vmatpush1.msra.mxu0 %v177
    %227 = vmatprep.subr.mxu0 0.0
    %228 = vmatpush1.msra.mxu0 %v178
    %229 = vmatprep.subr.mxu0 0.0
    %230 = vmatpush1.msra.mxu0 %v179
    %231 = vmatprep.subr.mxu0 0.0
    %232 = vmatpush1.msra.mxu0 0.0
    %233 = vmatprep.subr.mxu0 0.0
    %234 = vmatpush1.msra.mxu0 0.0
    %235 = vmatprep.subr.mxu0 0.0
    %236 = vmatpush1.msra.mxu0 0.0
    %237 = vmatprep.subr.mxu0 0.0
    %238 = vmatpush1.msra.mxu0 0.0
    %239 = vmatprep.subr.mxu0 0.0
    %240 = vmatpush1.msra.mxu0 0.0
    %241 = vmatprep.subr.mxu0 0.0
    %242 = vmatpush1.msra.mxu0 0.0
    %243 = vmatprep.subr.mxu0 0.0
    %244 = vmatpush1.msra.mxu0 0.0
    %245 = vmatprep.subr.mxu0 0.0
    %246 = vmatpush1.msra.mxu0 0.0
    %247 = vmatprep.subr.mxu0 0.0
    %248 = vmatpush1.msra.mxu0 0.0
    %249 = vmatprep.subr.mxu0 0.0
    %250 = vmatpush1.msra.mxu0 0.0
    %251 = vmatprep.subr.mxu0 0.0
    %252 = vmatpush1.msra.mxu0 0.0
    %253 = vmatprep.subr.mxu0 0.0
    %254 = vmatpush1.msra.mxu0 0.0
    %255 = vmatprep.mubr.f32.mxu0 %v189
    %256 = vmatmul.mubr.f32.gmra.mrb[0].mxu0 %v158
    %v257 = vpop.f32.mrb[0].mxu0
    %v258 = vadd.f32 %v185, %v257
    %v259 = vpop.f32.mrb[0].mxu0
    %260 = vdwg.mxu0
    %v261 = vxor.u32 %v258, 2147483648
    %v262 = vmul.f32 %v261, 1.442695
    %v263 = vpow.pop %v262
    %v264 = vadd.f32 %v263, 1.0
    %v265 = vrcp.pop %v264
    %v266 = vmul.f32 1.0, %v265
    %268 = vrot.lane.b32.xlu0 %v266, 7
    %v269 = vpop.permute.xlu0 %268
    %v271 = vsub.f32 %v266, %v269
    %272 = vset.pattern.permute.xlu0 0
    %273 = vperm.xlu0 %272, %v266
    %v274 = vpop.permute.xlu0 %273
    %v276 = vmul.f32 %v274, %v271
    %277 = vrot.lane.b32.xlu0 %v55, 106
    %v278 = vpop.permute.xlu0 %277
    %v280 = vmul.f32 %v276, %v278
    %v281 = vld [vmem:[%s5] sm:$0x1f]
    %v282 = vld [vmem:[%s5 + $0x8] sm:$0x1f]
    %v283 = vld [vmem:[%s5 + $0x10] sm:$0x1f]
    %v284 = vld [vmem:[%s5 + $0x18] sm:$0x1f]
    %v285 = vld [vmem:[%s6] sm:$0xf]
    %v287 = vlaneseq
    %v288 = vshrl.u32 %v287, 7
    %v289 = vsub.s32 0, %v288
    %v290 = vrot.slane %v285, %v289
    %v291 = vlaneseq
    %v292 = vshrl.u32 %v291, 7
    %v293 = vsub.s32 1, %v292
    %v294 = vrot.slane %v285, %v293
    %v295 = vlaneseq
    %v296 = vshrl.u32 %v295, 7
    %v297 = vsub.s32 2, %v296
    %v298 = vrot.slane %v285, %v297
    %v299 = vlaneseq
    %v300 = vshrl.u32 %v299, 7
    %v301 = vsub.s32 3, %v300
    %v302 = vrot.slane %v285, %v301
    %308 = vrot.lane.b32.xlu0 %v280, 120
    %v309 = vpop.permute.xlu0 %308
    %vm310 = vcmask 39936
    %v311 = vsel %vm310, %v309, 0
    %vm313 = vcmask 1044480
    %v315 = vsel %vm313, %v281, 0
    %v318 = vsel %vm313, %v282, 0
    %v321 = vsel %vm313, %v283, 0
    %v324 = vsel %vm313, %v284, 0
    %326 = vmatprep.subr.mxu0 %v318
    %327 = vmatpush1.msra.mxu0 %v315
    %328 = vmatprep.subr.mxu0 0.0
    %329 = vmatpush1.msra.mxu0 0.0
    %330 = vmatprep.subr.mxu0 0.0
    %331 = vmatpush1.msra.mxu0 0.0
    %332 = vmatprep.subr.mxu0 0.0
    %333 = vmatpush1.msra.mxu0 0.0
    %334 = vmatprep.subr.mxu0 0.0
    %335 = vmatpush1.msra.mxu0 0.0
    %336 = vmatprep.subr.mxu0 0.0
    %337 = vmatpush1.msra.mxu0 0.0
    %338 = vmatprep.subr.mxu0 0.0
    %339 = vmatpush1.msra.mxu0 0.0
    %340 = vmatprep.subr.mxu0 0.0
    %341 = vmatpush1.msra.mxu0 0.0
    %342 = vmatprep.subr.mxu0 0.0
    %343 = vmatpush1.msra.mxu0 0.0
    %344 = vmatprep.subr.mxu0 0.0
    %345 = vmatpush1.msra.mxu0 0.0
    %346 = vmatprep.subr.mxu0 0.0
    %347 = vmatpush1.msra.mxu0 0.0
    %348 = vmatprep.subr.mxu0 0.0
    %349 = vmatpush1.msra.mxu0 0.0
    %350 = vmatprep.subr.mxu0 0.0
    %351 = vmatpush1.msra.mxu0 0.0
    %352 = vmatprep.subr.mxu0 0.0
    %353 = vmatpush1.msra.mxu0 0.0
    %354 = vmatprep.subr.mxu0 0.0
    %355 = vmatpush1.msra.mxu0 0.0
    %356 = vmatprep.subr.mxu0 0.0
    %357 = vmatpush1.msra.mxu0 0.0
    %358 = vmatprep.subr.mxu0 0.0
    %359 = vmatpush1.msra.mxu0 0.0
    %360 = vmatprep.subr.mxu0 0.0
    %361 = vmatpush1.msra.mxu0 0.0
    %362 = vmatprep.subr.mxu0 0.0
    %363 = vmatpush1.msra.mxu0 0.0
    %364 = vmatprep.subr.mxu0 0.0
    %365 = vmatpush1.msra.mxu0 0.0
    %366 = vmatprep.subr.mxu0 0.0
    %367 = vmatpush1.msra.mxu0 0.0
    %368 = vmatprep.subr.mxu0 0.0
    %369 = vmatpush1.msra.mxu0 0.0
    %370 = vmatprep.subr.mxu0 0.0
    %371 = vmatpush1.msra.mxu0 0.0
    %372 = vmatprep.subr.mxu0 0.0
    %373 = vmatpush1.msra.mxu0 0.0
    %374 = vmatprep.subr.mxu0 0.0
    %375 = vmatpush1.msra.mxu0 0.0
    %376 = vmatprep.subr.mxu0 0.0
    %377 = vmatpush1.msra.mxu0 0.0
    %378 = vmatprep.subr.mxu0 0.0
    %379 = vmatpush1.msra.mxu0 0.0
    %380 = vmatprep.subr.mxu0 0.0
    %381 = vmatpush1.msra.mxu0 0.0
    %382 = vmatprep.subr.mxu0 0.0
    %383 = vmatpush1.msra.mxu0 0.0
    %384 = vmatprep.subr.mxu0 0.0
    %385 = vmatpush1.msra.mxu0 0.0
    %386 = vmatprep.subr.mxu0 0.0
    %387 = vmatpush1.msra.mxu0 0.0
    %388 = vmatprep.subr.mxu0 0.0
    %389 = vmatpush1.msra.mxu0 0.0
    %390 = vmatprep.mubr.f32.mxu0 0.0
    %391 = vmatmul.mubr.f32.gmra.mrb[0].mxu0 %v311
    %v392 = vpop.f32.mrb[0].mxu0
    %v393 = vadd.f32 %v290, %v392
    %v394 = vpop.f32.mrb[0].mxu0
    %v395 = vadd.f32 %v294, %v394
    %396 = vdwg.mxu0
    %397 = vmatprep.subr.mxu0 %v324
    %398 = vmatpush1.msra.mxu0 %v321
    %399 = vmatprep.subr.mxu0 0.0
    %400 = vmatpush1.msra.mxu0 0.0
    %401 = vmatprep.subr.mxu0 0.0
    %402 = vmatpush1.msra.mxu0 0.0
    %403 = vmatprep.subr.mxu0 0.0
    %404 = vmatpush1.msra.mxu0 0.0
    %405 = vmatprep.subr.mxu0 0.0
    %406 = vmatpush1.msra.mxu0 0.0
    %407 = vmatprep.subr.mxu0 0.0
    %408 = vmatpush1.msra.mxu0 0.0
    %409 = vmatprep.subr.mxu0 0.0
    %410 = vmatpush1.msra.mxu0 0.0
    %411 = vmatprep.subr.mxu0 0.0
    %412 = vmatpush1.msra.mxu0 0.0
    %413 = vmatprep.subr.mxu0 0.0
    %414 = vmatpush1.msra.mxu0 0.0
    %415 = vmatprep.subr.mxu0 0.0
    %416 = vmatpush1.msra.mxu0 0.0
    %417 = vmatprep.subr.mxu0 0.0
    %418 = vmatpush1.msra.mxu0 0.0
    %419 = vmatprep.subr.mxu0 0.0
    %420 = vmatpush1.msra.mxu0 0.0
    %421 = vmatprep.subr.mxu0 0.0
    %422 = vmatpush1.msra.mxu0 0.0
    %423 = vmatprep.subr.mxu0 0.0
    %424 = vmatpush1.msra.mxu0 0.0
    %425 = vmatprep.subr.mxu0 0.0
    %426 = vmatpush1.msra.mxu0 0.0
    %427 = vmatprep.subr.mxu0 0.0
    %428 = vmatpush1.msra.mxu0 0.0
    %429 = vmatprep.subr.mxu0 0.0
    %430 = vmatpush1.msra.mxu0 0.0
    %431 = vmatprep.subr.mxu0 0.0
    %432 = vmatpush1.msra.mxu0 0.0
    %433 = vmatprep.subr.mxu0 0.0
    %434 = vmatpush1.msra.mxu0 0.0
    %435 = vmatprep.subr.mxu0 0.0
    %436 = vmatpush1.msra.mxu0 0.0
    %437 = vmatprep.subr.mxu0 0.0
    %438 = vmatpush1.msra.mxu0 0.0
    %439 = vmatprep.subr.mxu0 0.0
    %440 = vmatpush1.msra.mxu0 0.0
    %441 = vmatprep.subr.mxu0 0.0
    %442 = vmatpush1.msra.mxu0 0.0
    %443 = vmatprep.subr.mxu0 0.0
    %444 = vmatpush1.msra.mxu0 0.0
    %445 = vmatprep.subr.mxu0 0.0
    %446 = vmatpush1.msra.mxu0 0.0
    %447 = vmatprep.subr.mxu0 0.0
    %448 = vmatpush1.msra.mxu0 0.0
    %449 = vmatprep.subr.mxu0 0.0
    %450 = vmatpush1.msra.mxu0 0.0
    %451 = vmatprep.subr.mxu0 0.0
    %452 = vmatpush1.msra.mxu0 0.0
    %453 = vmatprep.subr.mxu0 0.0
    %454 = vmatpush1.msra.mxu0 0.0
    %455 = vmatprep.subr.mxu0 0.0
    %456 = vmatpush1.msra.mxu0 0.0
    %457 = vmatprep.subr.mxu0 0.0
    %458 = vmatpush1.msra.mxu0 0.0
    %459 = vmatprep.subr.mxu0 0.0
    %460 = vmatpush1.msra.mxu0 0.0
    %461 = vmatprep.mubr.f32.mxu0 0.0
    %462 = vmatmul.mubr.f32.gmra.mrb[0].mxu0 %v311
    %v463 = vpop.f32.mrb[0].mxu0
    %v464 = vadd.f32 %v298, %v463
    %v465 = vpop.f32.mrb[0].mxu0
    %v466 = vadd.f32 %v302, %v465
    %467 = vdwg.mxu0
    %v468 = vxor.u32 %v393, 2147483648
    %v469 = vxor.u32 %v395, 2147483648
    %v470 = vxor.u32 %v464, 2147483648
    %v471 = vxor.u32 %v466, 2147483648
    %v472 = vmul.f32 %v468, 1.442695
    %v473 = vpow.pop %v472
    %v474 = vmul.f32 %v469, 1.442695
    %v475 = vpow.pop %v474
    %v476 = vmul.f32 %v470, 1.442695
    %v477 = vpow.pop %v476
    %v478 = vmul.f32 %v471, 1.442695
    %v479 = vpow.pop %v478
    %v480 = vadd.f32 %v473, 1.0
    %v481 = vadd.f32 %v475, 1.0
    %v482 = vadd.f32 %v477, 1.0
    %v483 = vadd.f32 %v479, 1.0
    %v484 = vrcp.pop %v480
    %v485 = vmul.f32 1.0, %v484
    %v486 = vrcp.pop %v481
    %v487 = vmul.f32 1.0, %v486
    %v488 = vrcp.pop %v482
    %v489 = vmul.f32 1.0, %v488
    %v490 = vrcp.pop %v483
    %v491 = vmul.f32 1.0, %v490
    %v492 = vld [vmem:[#allocation3] sm:$0xff]
    %v493 = vld [vmem:[#allocation3 + $0x8] sm:$0xff]
    %v494 = vld [vmem:[#allocation3 + $0x10] sm:$0xff]
    %v495 = vld [vmem:[#allocation3 + $0x18] sm:$0xff]
    %v496 = vld [vmem:[#allocation3 + $0x20] sm:$0xff]
    %v497 = vld [vmem:[#allocation3 + $0x28] sm:$0xff]
    %v498 = vld [vmem:[#allocation3 + $0x30] sm:$0xff]
    %v499 = vld [vmem:[#allocation3 + $0x38] sm:$0xff]
    %v500 = vld [vmem:[#allocation3 + $0x40] sm:$0xff]
    %v501 = vld [vmem:[#allocation3 + $0x48] sm:$0xff]
    %v502 = vld [vmem:[#allocation3 + $0x50] sm:$0xff]
    %v503 = vld [vmem:[#allocation3 + $0x58] sm:$0xff]
    %v504 = vld [vmem:[#allocation3 + $0x60] sm:$0xff]
    %v505 = vld [vmem:[#allocation3 + $0x68] sm:$0xff]
    %v506 = vld [vmem:[#allocation3 + $0x70] sm:$0xff]
    %v507 = vld [vmem:[#allocation3 + $0x78] sm:$0xff]
    %v508 = vld [vmem:[#allocation3 + $0x80] sm:$0xff]
    %v509 = vld [vmem:[#allocation3 + $0x88] sm:$0xff]
    %v510 = vld [vmem:[#allocation3 + $0x90] sm:$0xff]
    %v511 = vld [vmem:[#allocation3 + $0x98] sm:$0xff]
    %v512 = vld [vmem:[#allocation3 + $0xa0] sm:$0xff]
    %v513 = vld [vmem:[#allocation3 + $0xa8] sm:$0xff]
    %v514 = vld [vmem:[#allocation3 + $0xb0] sm:$0xff]
    %v515 = vld [vmem:[#allocation3 + $0xb8] sm:$0xff]
    %v516 = vld [vmem:[#allocation3 + $0xc0] sm:$0xff]
    %v517 = vld [vmem:[#allocation3 + $0xc8] sm:$0xff]
    %v518 = vld [vmem:[#allocation3 + $0xd0] sm:$0xff]
    %v519 = vld [vmem:[#allocation3 + $0xd8] sm:$0xff]
    %v520 = vld [vmem:[#allocation3 + $0xe0] sm:$0xff]
    %v521 = vld [vmem:[#allocation3 + $0xe8] sm:$0xff]
    %v522 = vld [vmem:[#allocation3 + $0xf0] sm:$0xff]
    %v523 = vld [vmem:[#allocation3 + $0xf8] sm:$0xff]
    %v524 = vld [vmem:[#allocation3 + $0x100] sm:$0xff]
    %v525 = vld [vmem:[#allocation3 + $0x108] sm:$0xff]
    %v526 = vld [vmem:[#allocation3 + $0x110] sm:$0xff]
    %v527 = vld [vmem:[#allocation3 + $0x118] sm:$0xff]
    %v528 = vld [vmem:[#allocation3 + $0x120] sm:$0xff]
    %v529 = vld [vmem:[#allocation3 + $0x128] sm:$0xff]
    %v530 = vld [vmem:[#allocation3 + $0x130] sm:$0xff]
    %v531 = vld [vmem:[#allocation3 + $0x138] sm:$0xff]
    %v532 = vld [vmem:[#allocation3 + $0x140] sm:$0xff]
    %v533 = vld [vmem:[#allocation3 + $0x148] sm:$0xff]
    %v534 = vld [vmem:[#allocation3 + $0x150] sm:$0xff]
    %v535 = vld [vmem:[#allocation3 + $0x158] sm:$0xff]
    %v536 = vld [vmem:[#allocation3 + $0x160] sm:$0xff]
    %v537 = vld [vmem:[#allocation3 + $0x168] sm:$0xff]
    %v538 = vld [vmem:[#allocation3 + $0x170] sm:$0xff]
    %v539 = vld [vmem:[#allocation3 + $0x178] sm:$0xff]
    %v540 = vld [vmem:[#allocation3 + $0x180] sm:$0xff]
    %v541 = vld [vmem:[#allocation3 + $0x188] sm:$0xff]
    %v542 = vld [vmem:[#allocation3 + $0x190] sm:$0xff]
    %v543 = vld [vmem:[#allocation3 + $0x198] sm:$0xff]
    %v544 = vld [vmem:[#allocation3 + $0x1a0] sm:$0xff]
    %v545 = vld [vmem:[#allocation3 + $0x1a8] sm:$0xff]
    %v546 = vld [vmem:[#allocation3 + $0x1b0] sm:$0xff]
    %v547 = vld [vmem:[#allocation3 + $0x1b8] sm:$0xff]
    %v548 = vld [vmem:[#allocation3 + $0x1c0] sm:$0xff]
    %v549 = vld [vmem:[#allocation3 + $0x1c8] sm:$0xff]
    %v550 = vld [vmem:[#allocation3 + $0x1d0] sm:$0xff]
    %v551 = vld [vmem:[#allocation3 + $0x1d8] sm:$0xff]
    %v552 = vld [vmem:[#allocation3 + $0x1e0] sm:$0xff]
    %v553 = vld [vmem:[#allocation3 + $0x1e8] sm:$0xff]
    %v554 = vld [vmem:[#allocation3 + $0x1f0] sm:$0xff]
    %v555 = vld [vmem:[#allocation3 + $0x1f8] sm:$0xff]
    %v556 = vld [vmem:[#allocation3 + $0x200] sm:$0xff]
    %v557 = vld [vmem:[#allocation3 + $0x208] sm:$0xff]
    %v558 = vld [vmem:[#allocation3 + $0x210] sm:$0xff]
    %v559 = vld [vmem:[#allocation3 + $0x218] sm:$0xff]
    %v560 = vld [vmem:[#allocation3 + $0x220] sm:$0xff]
    %v561 = vld [vmem:[#allocation3 + $0x228] sm:$0xff]
    %v562 = vld [vmem:[#allocation3 + $0x230] sm:$0xff]
    %v563 = vld [vmem:[#allocation3 + $0x238] sm:$0xff]
    %v564 = vld [vmem:[#allocation3 + $0x240] sm:$0xff]
    %v565 = vld [vmem:[#allocation3 + $0x248] sm:$0xff]
    %v566 = vld [vmem:[#allocation3 + $0x250] sm:$0xff]
    %v567 = vld [vmem:[#allocation3 + $0x258] sm:$0xff]
    %v568 = vld [vmem:[#allocation3 + $0x260] sm:$0xff]
    %v569 = vld [vmem:[#allocation3 + $0x268] sm:$0xff]
    %v570 = vld [vmem:[#allocation3 + $0x270] sm:$0xff]
    %v571 = vld [vmem:[#allocation3 + $0x278] sm:$0xff]
    %v572 = vld [vmem:[#allocation3 + $0x280] sm:$0xff]
    %v573 = vld [vmem:[#allocation3 + $0x288] sm:$0xff]
    %v574 = vld [vmem:[#allocation3 + $0x290] sm:$0xff]
    %v575 = vld [vmem:[#allocation3 + $0x298] sm:$0xff]
    %v576 = vld [vmem:[#allocation3 + $0x2a0] sm:$0xff]
    %v577 = vld [vmem:[#allocation3 + $0x2a8] sm:$0xff]
    %v578 = vld [vmem:[#allocation3 + $0x2b0] sm:$0xff]
    %v579 = vld [vmem:[#allocation3 + $0x2b8] sm:$0xff]
    %v580 = vld [vmem:[#allocation3 + $0x2c0] sm:$0xff]
    %v581 = vld [vmem:[#allocation3 + $0x2c8] sm:$0xff]
    %v582 = vld [vmem:[#allocation3 + $0x2d0] sm:$0xff]
    %v583 = vld [vmem:[#allocation3 + $0x2d8] sm:$0xff]
    %v584 = vld [vmem:[#allocation3 + $0x2e0] sm:$0xff]
    %v585 = vld [vmem:[#allocation3 + $0x2e8] sm:$0xff]
    %v586 = vld [vmem:[#allocation3 + $0x2f0] sm:$0xff]
    %v587 = vld [vmem:[#allocation3 + $0x2f8] sm:$0xff]
    %v588 = vld [vmem:[#allocation3 + $0x300] sm:$0xff]
    %v589 = vld [vmem:[#allocation3 + $0x308] sm:$0xff]
    %v590 = vld [vmem:[#allocation3 + $0x310] sm:$0xff]
    %v591 = vld [vmem:[#allocation3 + $0x318] sm:$0xff]
    %v592 = vld [vmem:[#allocation3 + $0x320] sm:$0xff]
    %v593 = vld [vmem:[#allocation3 + $0x328] sm:$0xff]
    %v594 = vld [vmem:[#allocation3 + $0x330] sm:$0xff]
    %v595 = vld [vmem:[#allocation3 + $0x338] sm:$0xff]
    %v596 = vld [vmem:[#allocation3 + $0x340] sm:$0xff]
    %v597 = vld [vmem:[#allocation3 + $0x348] sm:$0xff]
    %v598 = vld [vmem:[#allocation3 + $0x350] sm:$0xff]
    %v599 = vld [vmem:[#allocation3 + $0x358] sm:$0xff]
    %v600 = vld [vmem:[#allocation3 + $0x360] sm:$0xff]
    %v601 = vld [vmem:[#allocation3 + $0x368] sm:$0xff]
    %v602 = vld [vmem:[#allocation3 + $0x370] sm:$0xff]
    %v603 = vld [vmem:[#allocation3 + $0x378] sm:$0xff]
    %v604 = vld [vmem:[#allocation3 + $0x380] sm:$0xff]
    %v605 = vld [vmem:[#allocation3 + $0x388] sm:$0xff]
    %v606 = vld [vmem:[#allocation3 + $0x390] sm:$0xff]
    %v607 = vld [vmem:[#allocation3 + $0x398] sm:$0xff]
    %v608 = vld [vmem:[#allocation3 + $0x3a0] sm:$0xff]
    %v609 = vld [vmem:[#allocation3 + $0x3a8] sm:$0xff]
    %v610 = vld [vmem:[#allocation3 + $0x3b0] sm:$0xff]
    %v611 = vld [vmem:[#allocation3 + $0x3b8] sm:$0xff]
    %v612 = vld [vmem:[#allocation3 + $0x3c0] sm:$0xff]
    %v613 = vld [vmem:[#allocation3 + $0x3c8] sm:$0xff]
    %v614 = vld [vmem:[#allocation3 + $0x3d0] sm:$0xff]
    %v615 = vld [vmem:[#allocation3 + $0x3d8] sm:$0xff]
    %v616 = vld [vmem:[#allocation3 + $0x3e0] sm:$0xff]
    %v617 = vld [vmem:[#allocation3 + $0x3e8] sm:$0xff]
    %v618 = vld [vmem:[#allocation3 + $0x3f0] sm:$0xff]
    %v619 = vld [vmem:[#allocation3 + $0x3f8] sm:$0xff]
    %v620 = vld [vmem:[%s8] sm:$0x3]
    %v622 = vlaneseq
    %v623 = vshrl.u32 %v622, 7
    %v624 = vsub.s32 0, %v623
    %v625 = vrot.slane %v620, %v624
    %v626 = vlaneseq
    %v627 = vshrl.u32 %v626, 7
    %v628 = vsub.s32 1, %v627
    %v629 = vrot.slane %v620, %v628
    %632 = vmatprep.subr.mxu0 %v493
    %633 = vmatpush1.msra.mxu0 %v492
    %634 = vmatprep.subr.mxu0 %v495
    %635 = vmatpush1.msra.mxu0 %v494
    %636 = vmatprep.subr.mxu0 %v497
    %637 = vmatpush1.msra.mxu0 %v496
    %638 = vmatprep.subr.mxu0 %v499
    %639 = vmatpush1.msra.mxu0 %v498
    %640 = vmatprep.subr.mxu0 %v501
    %641 = vmatpush1.msra.mxu0 %v500
    %642 = vmatprep.subr.mxu0 %v503
    %643 = vmatpush1.msra.mxu0 %v502
    %644 = vmatprep.subr.mxu0 %v505
    %645 = vmatpush1.msra.mxu0 %v504
    %646 = vmatprep.subr.mxu0 %v507
    %647 = vmatpush1.msra.mxu0 %v506
    %648 = vmatprep.subr.mxu0 %v509
    %649 = vmatpush1.msra.mxu0 %v508
    %650 = vmatprep.subr.mxu0 %v511
    %651 = vmatpush1.msra.mxu0 %v510
    %652 = vmatprep.subr.mxu0 %v513
    %653 = vmatpush1.msra.mxu0 %v512
    %654 = vmatprep.subr.mxu0 %v515
    %655 = vmatpush1.msra.mxu0 %v514
    %656 = vmatprep.subr.mxu0 %v517
    %657 = vmatpush1.msra.mxu0 %v516
    %658 = vmatprep.subr.mxu0 %v519
    %659 = vmatpush1.msra.mxu0 %v518
    %660 = vmatprep.subr.mxu0 %v521
    %661 = vmatpush1.msra.mxu0 %v520
    %662 = vmatprep.subr.mxu0 %v523
    %663 = vmatpush1.msra.mxu0 %v522
    %664 = vmatprep.subr.mxu0 %v525
    %665 = vmatpush1.msra.mxu0 %v524
    %666 = vmatprep.subr.mxu0 %v527
    %667 = vmatpush1.msra.mxu0 %v526
    %668 = vmatprep.subr.mxu0 %v529
    %669 = vmatpush1.msra.mxu0 %v528
    %670 = vmatprep.subr.mxu0 %v531
    %671 = vmatpush1.msra.mxu0 %v530
    %672 = vmatprep.subr.mxu0 %v533
    %673 = vmatpush1.msra.mxu0 %v532
    %674 = vmatprep.subr.mxu0 %v535
    %675 = vmatpush1.msra.mxu0 %v534
    %676 = vmatprep.subr.mxu0 %v537
    %677 = vmatpush1.msra.mxu0 %v536
    %678 = vmatprep.subr.mxu0 %v539
    %679 = vmatpush1.msra.mxu0 %v538
    %680 = vmatprep.subr.mxu0 %v541
    %681 = vmatpush1.msra.mxu0 %v540
    %682 = vmatprep.subr.mxu0 %v543
    %683 = vmatpush1.msra.mxu0 %v542
    %684 = vmatprep.subr.mxu0 %v545
    %685 = vmatpush1.msra.mxu0 %v544
    %686 = vmatprep.subr.mxu0 %v547
    %687 = vmatpush1.msra.mxu0 %v546
    %688 = vmatprep.subr.mxu0 %v549
    %689 = vmatpush1.msra.mxu0 %v548
    %690 = vmatprep.subr.mxu0 %v551
    %691 = vmatpush1.msra.mxu0 %v550
    %692 = vmatprep.subr.mxu0 %v553
    %693 = vmatpush1.msra.mxu0 %v552
    %694 = vmatprep.subr.mxu0 %v555
    %695 = vmatpush1.msra.mxu0 %v554
    %696 = vmatprep.mubr.f32.mxu0 %v487
    %697 = vmatmul.mubr.f32.gmra.mrb[0].mxu0 %v485
    %v698 = vpop.f32.mrb[0].mxu0
    %v699 = vadd.f32 %v625, %v698
    %v700 = vpop.f32.mrb[0].mxu0
    %v701 = vadd.f32 %v629, %v700
    %702 = vdwg.mxu0
    %703 = vmatprep.subr.mxu0 %v557
    %704 = vmatpush1.msra.mxu0 %v556
    %705 = vmatprep.subr.mxu0 %v559
    %706 = vmatpush1.msra.mxu0 %v558
    %707 = vmatprep.subr.mxu0 %v561
    %708 = vmatpush1.msra.mxu0 %v560
    %709 = vmatprep.subr.mxu0 %v563
    %710 = vmatpush1.msra.mxu0 %v562
    %711 = vmatprep.subr.mxu0 %v565
    %712 = vmatpush1.msra.mxu0 %v564
    %713 = vmatprep.subr.mxu0 %v567
    %714 = vmatpush1.msra.mxu0 %v566
    %715 = vmatprep.subr.mxu0 %v569
    %716 = vmatpush1.msra.mxu0 %v568
    %717 = vmatprep.subr.mxu0 %v571
    %718 = vmatpush1.msra.mxu0 %v570
    %719 = vmatprep.subr.mxu0 %v573
    %720 = vmatpush1.msra.mxu0 %v572
    %721 = vmatprep.subr.mxu0 %v575
    %722 = vmatpush1.msra.mxu0 %v574
    %723 = vmatprep.subr.mxu0 %v577
    %724 = vmatpush1.msra.mxu0 %v576
    %725 = vmatprep.subr.mxu0 %v579
    %726 = vmatpush1.msra.mxu0 %v578
    %727 = vmatprep.subr.mxu0 %v581
    %728 = vmatpush1.msra.mxu0 %v580
    %729 = vmatprep.subr.mxu0 %v583
    %730 = vmatpush1.msra.mxu0 %v582
    %731 = vmatprep.subr.mxu0 %v585
    %732 = vmatpush1.msra.mxu0 %v584
    %733 = vmatprep.subr.mxu0 %v587
    %734 = vmatpush1.msra.mxu0 %v586
    %735 = vmatprep.subr.mxu0 %v589
    %736 = vmatpush1.msra.mxu0 %v588
    %737 = vmatprep.subr.mxu0 %v591
    %738 = vmatpush1.msra.mxu0 %v590
    %739 = vmatprep.subr.mxu0 %v593
    %740 = vmatpush1.msra.mxu0 %v592
    %741 = vmatprep.subr.mxu0 %v595
    %742 = vmatpush1.msra.mxu0 %v594
    %743 = vmatprep.subr.mxu0 %v597
    %744 = vmatpush1.msra.mxu0 %v596
    %745 = vmatprep.subr.mxu0 %v599
    %746 = vmatpush1.msra.mxu0 %v598
    %747 = vmatprep.subr.mxu0 %v601
    %748 = vmatpush1.msra.mxu0 %v600
    %749 = vmatprep.subr.mxu0 %v603
    %750 = vmatpush1.msra.mxu0 %v602
    %751 = vmatprep.subr.mxu0 %v605
    %752 = vmatpush1.msra.mxu0 %v604
    %753 = vmatprep.subr.mxu0 %v607
    %754 = vmatpush1.msra.mxu0 %v606
    %755 = vmatprep.subr.mxu0 %v609
    %756 = vmatpush1.msra.mxu0 %v608
    %757 = vmatprep.subr.mxu0 %v611
    %758 = vmatpush1.msra.mxu0 %v610
    %759 = vmatprep.subr.mxu0 %v613
    %760 = vmatpush1.msra.mxu0 %v612
    %761 = vmatprep.subr.mxu0 %v615
    %762 = vmatpush1.msra.mxu0 %v614
    %763 = vmatprep.subr.mxu0 %v617
    %764 = vmatpush1.msra.mxu0 %v616
    %765 = vmatprep.subr.mxu0 %v619
    %766 = vmatpush1.msra.mxu0 %v618
    %767 = vmatprep.mubr.f32.mxu0 %v491
    %768 = vmatmul.mubr.f32.gmra.mrb[0].mxu0 %v489
    %v769 = vpop.f32.mrb[0].mxu0
    %v770 = vadd.f32 %v699, %v769
    %v771 = vpop.f32.mrb[0].mxu0
    %v772 = vadd.f32 %v701, %v771
    %773 = vdwg.mxu0
    %v774 = vxor.u32 %v770, 2147483648
    %v775 = vxor.u32 %v772, 2147483648
    %v776 = vmul.f32 %v774, 1.442695
    %v777 = vpow.pop %v776
    %v778 = vmul.f32 %v775, 1.442695
    %v779 = vpow.pop %v778
    %v780 = vadd.f32 %v777, 1.0
    %v781 = vadd.f32 %v779, 1.0
    %v782 = vrcp.pop %v780
    %v783 = vmul.f32 1.0, %v782
    %v784 = vrcp.pop %v781
    %v785 = vmul.f32 1.0, %v784
    %v786 = vld [vmem:[%s9] sm:$0xff]
    %v787 = vld [vmem:[%s9 + $0x8] sm:$0xff]
    %v788 = vld [vmem:[%s9 + $0x10] sm:$0xff]
    %v789 = vld [vmem:[%s9 + $0x18] sm:$0xff]
    %v790 = vld [vmem:[%s9 + $0x20] sm:$0xff]
    %v791 = vld [vmem:[%s9 + $0x28] sm:$0xff]
    %v792 = vld [vmem:[%s9 + $0x30] sm:$0xff]
    %v793 = vld [vmem:[%s9 + $0x38] sm:$0xff]
    %v794 = vld [vmem:[%s9 + $0x40] sm:$0xff]
    %v795 = vld [vmem:[%s9 + $0x48] sm:$0xff]
    %v796 = vld [vmem:[%s9 + $0x50] sm:$0xff]
    %v797 = vld [vmem:[%s9 + $0x58] sm:$0xff]
    %v798 = vld [vmem:[%s9 + $0x60] sm:$0xff]
    %v799 = vld [vmem:[%s9 + $0x68] sm:$0xff]
    %v800 = vld [vmem:[%s9 + $0x70] sm:$0xff]
    %v801 = vld [vmem:[%s9 + $0x78] sm:$0xff]
    %v802 = vld [vmem:[%s9 + $0x80] sm:$0xff]
    %v803 = vld [vmem:[%s9 + $0x88] sm:$0xff]
    %v804 = vld [vmem:[%s9 + $0x90] sm:$0xff]
    %v805 = vld [vmem:[%s9 + $0x98] sm:$0xff]
    %v806 = vld [vmem:[%s9 + $0xa0] sm:$0xff]
    %v807 = vld [vmem:[%s9 + $0xa8] sm:$0xff]
    %v808 = vld [vmem:[%s9 + $0xb0] sm:$0xff]
    %v809 = vld [vmem:[%s9 + $0xb8] sm:$0xff]
    %v810 = vld [vmem:[%s9 + $0xc0] sm:$0xff]
    %v811 = vld [vmem:[%s9 + $0xc8] sm:$0xff]
    %v812 = vld [vmem:[%s9 + $0xd0] sm:$0xff]
    %v813 = vld [vmem:[%s9 + $0xd8] sm:$0xff]
    %v814 = vld [vmem:[%s9 + $0xe0] sm:$0xff]
    %v815 = vld [vmem:[%s9 + $0xe8] sm:$0xff]
    %v816 = vld [vmem:[%s9 + $0xf0] sm:$0xff]
    %v817 = vld [vmem:[%s9 + $0xf8] sm:$0xff]
    %v818 = vld [vmem:[#allocation2] sm:$0x1]
    %v820 = vlaneseq
    %v821 = vshrl.u32 %v820, 7
    %v822 = vsub.s32 0, %v821
    %v823 = vrot.slane %v818, %v822
    %825 = vmatprep.subr.mxu0 0.0
    %826 = vmatpush1.msra.mxu0 %v786
    %827 = vmatprep.subr.mxu0 0.0
    %828 = vmatpush1.msra.mxu0 %v787
    %829 = vmatprep.subr.mxu0 0.0
    %830 = vmatpush1.msra.mxu0 %v788
    %831 = vmatprep.subr.mxu0 0.0
    %832 = vmatpush1.msra.mxu0 %v789
    %833 = vmatprep.subr.mxu0 0.0
    %834 = vmatpush1.msra.mxu0 %v790
    %835 = vmatprep.subr.mxu0 0.0
    %836 = vmatpush1.msra.mxu0 %v791
    %837 = vmatprep.subr.mxu0 0.0
    %838 = vmatpush1.msra.mxu0 %v792
    %839 = vmatprep.subr.mxu0 0.0
    %840 = vmatpush1.msra.mxu0 %v793
    %841 = vmatprep.subr.mxu0 0.0
    %842 = vmatpush1.msra.mxu0 %v794
    %843 = vmatprep.subr.mxu0 0.0
    %844 = vmatpush1.msra.mxu0 %v795
    %845 = vmatprep.subr.mxu0 0.0
    %846 = vmatpush1.msra.mxu0 %v796
    %847 = vmatprep.subr.mxu0 0.0
    %848 = vmatpush1.msra.mxu0 %v797
    %849 = vmatprep.subr.mxu0 0.0
    %850 = vmatpush1.msra.mxu0 %v798
    %851 = vmatprep.subr.mxu0 0.0
    %852 = vmatpush1.msra.mxu0 %v799
    %853 = vmatprep.subr.mxu0 0.0
    %854 = vmatpush1.msra.mxu0 %v800
    %855 = vmatprep.subr.mxu0 0.0
    %856 = vmatpush1.msra.mxu0 %v801
    %857 = vmatprep.subr.mxu0 0.0
    %858 = vmatpush1.msra.mxu0 %v802
    %859 = vmatprep.subr.mxu0 0.0
    %860 = vmatpush1.msra.mxu0 %v803
    %861 = vmatprep.subr.mxu0 0.0
    %862 = vmatpush1.msra.mxu0 %v804
    %863 = vmatprep.subr.mxu0 0.0
    %864 = vmatpush1.msra.mxu0 %v805
    %865 = vmatprep.subr.mxu0 0.0
    %866 = vmatpush1.msra.mxu0 %v806
    %867 = vmatprep.subr.mxu0 0.0
    %868 = vmatpush1.msra.mxu0 %v807
    %869 = vmatprep.subr.mxu0 0.0
    %870 = vmatpush1.msra.mxu0 %v808
    %871 = vmatprep.subr.mxu0 0.0
    %872 = vmatpush1.msra.mxu0 %v809
    %873 = vmatprep.subr.mxu0 0.0
    %874 = vmatpush1.msra.mxu0 %v810
    %875 = vmatprep.subr.mxu0 0.0
    %876 = vmatpush1.msra.mxu0 %v811
    %877 = vmatprep.subr.mxu0 0.0
    %878 = vmatpush1.msra.mxu0 %v812
    %879 = vmatprep.subr.mxu0 0.0
    %880 = vmatpush1.msra.mxu0 %v813
    %881 = vmatprep.subr.mxu0 0.0
    %882 = vmatpush1.msra.mxu0 %v814
    %883 = vmatprep.subr.mxu0 0.0
    %884 = vmatpush1.msra.mxu0 %v815
    %885 = vmatprep.subr.mxu0 0.0
    %886 = vmatpush1.msra.mxu0 %v816
    %887 = vmatprep.subr.mxu0 0.0
    %888 = vmatpush1.msra.mxu0 %v817
    %889 = vmatprep.mubr.f32.mxu0 %v785
    %890 = vmatmul.mubr.f32.gmra.mrb[0].mxu0 %v783
    %v891 = vpop.f32.mrb[0].mxu0
    %v892 = vadd.f32 %v823, %v891
    %v893 = vpop.f32.mrb[0].mxu0
    %894 = vdwg.mxu0
    %v895 = vxor.u32 %v892, 2147483648
    %v896 = vmul.f32 %v895, 1.442695
    %v897 = vpow.pop %v896
    %v898 = vadd.f32 %v897, 1.0
    %v899 = vrcp.pop %v898
    %v900 = vmul.f32 1.0, %v899
    %901 = vrot.lane.b32.xlu0 %v266, 127
    %v902 = vpop.permute.xlu0 %901
    %v904 = vsub.f32 %v266, %v902
    %906 = vrot.lane.b32.xlu0 %v900, 6
    %v907 = vpop.permute.xlu0 %906
    %v909 = vmul.f32 %v904, %v907
    %911 = vrot.lane.b32.xlu0 %v909, 1
    %v912 = vpop.permute.xlu0 %911
    %v914 = vadd.f32 %v266, %v912
    %916 = vrot.lane.b32.xlu0 %v914, 121
    %v917 = vpop.permute.xlu0 %916
    %919 = vrot.lane.b32.xlu0 %v266, 1
    %v920 = vpop.permute.xlu0 %919
    %vm922 = vcmask 7168
    %v923 = vsel %vm922, %v917, %v920
    %vm924 = vcmask 113664
    %v925 = vsel %vm924, %v923, 0.0
    %vm926 = vcmask 130048
    %927 = vst.msk [vmem:[#allocation6] sm:$0xff] %vm926, %v925
    // Predicated region
    $region50: #{tpu_custom_call.1} parent=1 // pred_check
      _
    $region51: #{tpu_custom_call.1} parent=1 // pred_check_branch
      %929 = sbr.rel (0) target = $region53
    $region52: #{tpu_custom_call.1} parent=1 // pred_region
      %s931 = ssub.s32 128, 128
      %932 = vsyncadd [#allocation5], %s931
      %s934 = sshll.u32 [#allocation6], 4
      %s935 = int_to_ptr.vmem [resolvable:$true] %s934
      %937 = dma.vmem_to_hbm [thread:$0]  %s935, 128, %s11, [#allocation5]
    $region53: #{tpu_custom_call.1} parent=1 // pred_fallthru
      _
    // Predicated region
    $region54: #{tpu_custom_call.1} parent=1 // pred_check
      _
    $region55: #{tpu_custom_call.1} parent=1 // pred_check_branch
      %939 = sbr.rel (0) target = $region57
    $region56: #{tpu_custom_call.1} parent=1 // pred_region
      %940 = dma.done [#allocation5], 128
    $region57: #{tpu_custom_call.1} parent=1 // pred_fallthru
      _
    %941 = vsyncpa [#allocation4], 1
    %942 = vsyncpa [#allocation5], 1

</llo_original>
